<compile_context>
chip_gen: v5e
topology: v5e:2x2
jax: 0.10.0
libtpu: 0.0.40
codegen_flags: <defaults>
</compile_context>

<pallas_src>
import functools

import jax
import jax.numpy as jnp
from jax.experimental import pallas as pl
from jax.experimental.pallas import tpu as pltpu


def _round_up(n, m):
    return (n + m - 1) // m * m


def _double_conv_kernel(x_ref, w1_ref, sh1_ref, w2_ref, sh2_ref, mask_ref,
                        o_ref, xs_ref, *, seg_len, band, n_batch):
    # x_ref:   (Bt, Cin, L)    input block, ORIGINAL layout
    # w1_ref:  (Cmid, 3*band)  conv1 weights, taps [prev|curr|next], BN1 scale
    #                          folded, zero columns on per-band pad rows
    # sh1_ref: (Cmid, 1)       folded BN1 shift
    # w2_ref:  (Cout, 3*band)  conv2 weights (BN2 scale folded)
    # sh2_ref: (Cout, 1)       folded BN2 shift
    # mask_ref:(2, Np) f32     row0: keep-prev lanes, row1: keep-next lanes
    # o_ref:   (Bt, Cout, L)   output block, ORIGINAL layout
    # xs_ref:  (3*band, Np)    tap-staging scratch (8-aligned band stride)
    cdt = xs_ref.dtype
    n_lanes = xs_ref.shape[-1]
    cin = x_ref.shape[1]
    cmid = w1_ref.shape[0]

    keep_prev = mask_ref[0:1, :] != 0.0          # (1, Np) bool
    keep_next = mask_ref[1:2, :] != 0.0

    # Zero the per-band pad rows.  Redone every step => no cross-step scratch
    # state (safe under "parallel" grid semantics / megacore sharding).  The
    # matching weight columns are zero, so these rows only need to stay
    # finite; when channels are already multiples of 8 this is skipped.
    c_lo = min(cin, cmid)
    if c_lo < band:
        z = jnp.zeros((band - c_lo, n_lanes), cdt)
        for tap in range(3):
            xs_ref[tap * band + c_lo:(tap + 1) * band, :] = z

    def conv3(packed, w_ref, sh_ref):
        # packed: (C, Np) lane-packed activations.  Stage the three taps at
        # 8-aligned sublane bands and do ONE wide-K MXU push.
        c = packed.shape[0]
        xs_ref[band:band + c, :] = packed                                   # curr
        xs_ref[0:c, :] = jnp.where(keep_prev,
                                   jnp.roll(packed, 1, axis=1), 0.0)        # prev
        xs_ref[2 * band:2 * band + c, :] = jnp.where(
            keep_next, jnp.roll(packed, -1, axis=1), 0.0)                   # next
        acc = jnp.dot(w_ref[...], xs_ref[...],
                      preferred_element_type=jnp.float32)                   # (Co, Np)
        return jnp.maximum(acc + sh_ref[...], 0.0)

    # ---- pack the Bt batch rows along the lane axis (VMEM only, no HBM pass) ----
    segs = [x_ref[b].astype(cdt) for b in range(n_batch)]
    pad_lanes = n_lanes - n_batch * seg_len
    if pad_lanes:
        segs.append(jnp.zeros((cin, pad_lanes), cdt))
    x_packed = segs[0] if len(segs) == 1 else jnp.concatenate(segs, axis=1)

    h = conv3(x_packed, w1_ref, sh1_ref)           # conv1 -> +BN1 shift -> ReLU
    y = conv3(h.astype(cdt), w2_ref, sh2_ref)      # conv2 -> +BN2 shift -> ReLU

    # ---- unpack lanes back to the original (Bt, Cout, L) layout ----
    for b in range(n_batch):
        o_ref[b] = y[:, b * seg_len:(b + 1) * seg_len].astype(o_ref.dtype)


def _flatten_weight(w, band):
    """(Co, Ci, 3) -> (Co, 3*band), taps [prev|curr|next]; pad columns zero."""
    _, ci, _ = w.shape
    taps = []
    for k in range(3):
        t = w[:, :, k]
        if band > ci:
            t = jnp.pad(t, ((0, 0), (0, band - ci)))
        taps.append(t)
    return jnp.concatenate(taps, axis=1)


_MAX_PACK = 64                  # cap on batch rows packed per step (kernel unroll)
_SLAB_BUDGET_BYTES = 1 << 20    # ~1 MiB per activation slab: with ~10 live
                                # slab-sized buffers this stays well under v5e's
                                # 16 MiB scoped default and v7x's 64 MiB VMEM.


def _pick_batch_tile(B, L, c_max):
    budget_lanes = max(128, _SLAB_BUDGET_BYTES // (4 * max(c_max, 1)))
    bt = max(1, min(B, budget_lanes // max(L, 1), _MAX_PACK))
    # Keep >= 2 grid steps so the "parallel" grid axis can shard across v7x's
    # two TensorCores (negligible cost on single-core v5e/v6e at these sizes).
    if B >= 2 and bt >= B:
        bt = (B + 1) // 2
    return bt


def double_conv(x, w1, g1, b1, m1, v1, w2, g2, b2, m2, v2,
                eps=1e-5, compute_dtype=jnp.float32):
    """x: (B, Cin, L) float32.  w1: (Cmid, Cin, 3), w2: (Cout, Cmid, 3).

    Eval-mode BatchNorm is folded: scale into the conv weights, shift kept.
    Set compute_dtype=jnp.bfloat16 on v6e/v7x for MXU throughput at larger
    channel counts (f32 accumulate; default f32 meets the 1e-4 check).
    """
    B, Cin, L = x.shape
    Cmid = w1.shape[0]
    Cout = w2.shape[0]
    f32 = jnp.float32

    # Fold BatchNorm (inference): per-channel scale -> weights, shift kept.
    s1 = (g1 / jnp.sqrt(v1 + eps)).astype(f32)
    s2 = (g2 / jnp.sqrt(v2 + eps)).astype(f32)
    sh1 = (b1 - m1 * s1).reshape(Cmid, 1).astype(f32)
    sh2 = (b2 - m2 * s2).reshape(Cout, 1).astype(f32)

    band = _round_up(max(Cin, Cmid), 8)          # 8-aligned sublane band stride
    w1f = _flatten_weight(w1.astype(f32) * s1[:, None, None], band).astype(compute_dtype)
    w2f = _flatten_weight(w2.astype(f32) * s2[:, None, None], band).astype(compute_dtype)

    # Batch tiling: Bt rows packed along lanes per grid step (ragged last group).
    Bt = _pick_batch_tile(B, L, max(band, Cout))
    nB = -(-B // Bt)
    Bp = nB * Bt
    xb = x.astype(f32)
    if Bp != B:
        xb = jnp.pad(xb, ((0, Bp - B), (0, 0), (0, 0)))

    Np = _round_up(Bt * L, 128)
    # Precomputed boundary / padding lane masks (no modulo inside the kernel).
    lane = jnp.arange(Np, dtype=jnp.int32)
    pos = lane % L
    valid = lane < Bt * L
    keep_prev = ((pos != 0) & valid).astype(f32)
    keep_next = ((pos != L - 1) & valid).astype(f32)
    masks = jnp.stack([keep_prev, keep_next], axis=0)        # (2, Np)

    kernel = functools.partial(_double_conv_kernel,
                               seg_len=L, band=band, n_batch=Bt)

    out = pl.pallas_call(
        kernel,
        out_shape=jax.ShapeDtypeStruct((Bp, Cout, L), x.dtype),
        grid_spec=pltpu.PrefetchScalarGridSpec(
            num_scalar_prefetch=0,
            grid=(nB,),
            in_specs=[
                pl.BlockSpec((Bt, Cin, L), lambda g: (g, 0, 0)),
                pl.BlockSpec((Cmid, 3 * band), lambda g: (0, 0)),
                pl.BlockSpec((Cmid, 1), lambda g: (0, 0)),
                pl.BlockSpec((Cout, 3 * band), lambda g: (0, 0)),
                pl.BlockSpec((Cout, 1), lambda g: (0, 0)),
                pl.BlockSpec((2, Np), lambda g: (0, 0)),
            ],
            out_specs=pl.BlockSpec((Bt, Cout, L), lambda g: (g, 0, 0)),
            scratch_shapes=[pltpu.VMEM((3 * band, Np), compute_dtype)],
        ),
        compiler_params=pltpu.CompilerParams(
            dimension_semantics=("parallel",),
            vmem_limit_bytes=32 * 1024 * 1024,
        ),
    )(xb, w1f, sh1, w2f, sh2, masks)

    return out if Bp == B else out[:B]


def _reference(x, w1, g1, b1, m1, v1, w2, g2, b2, m2, v2, eps=1e-5):
    """Pure-JAX reference (same semantics as PyTorch eval-mode forward)."""
    def conv1d(inp, w):
        return jax.lax.conv_general_dilated(
            inp, w, window_strides=(1,), padding=((1, 1),),
            dimension_numbers=("NCH", "OIH", "NCH"),
        )

    def bn(inp, g, b, m, v):
        s = g / jnp.sqrt(v + eps)
        return inp * s[None, :, None] + (b - m * s)[None, :, None]

    h = jnp.maximum(bn(conv1d(x, w1), g1, b1, m1, v1), 0.0)
    y = jnp.maximum(bn(conv1d(h, w2), g2, b2, m2, v2), 0.0)
    return y


if __name__ == "__main__":
    B, Cin, Cmid, Cout, L = 2, 4, 8, 8, 16

    key = jax.random.PRNGKey(0)
    ks = jax.random.split(key, 9)
    x = jax.random.normal(ks[0], (B, Cin, L), dtype=jnp.float32)

    w1 = jax.random.normal(ks[1], (Cmid, Cin, 3), dtype=jnp.float32) * 0.2
    w2 = jax.random.normal(ks[2], (Cout, Cmid, 3), dtype=jnp.float32) * 0.2

    g1 = 1.0 + 0.1 * jax.random.normal(ks[3], (Cmid,), dtype=jnp.float32)
    b1 = 0.1 * jax.random.normal(ks[4], (Cmid,), dtype=jnp.float32)
    m1 = 0.05 * jax.random.normal(ks[5], (Cmid,), dtype=jnp.float32)
    v1 = jnp.abs(1.0 + 0.1 * jax.random.normal(ks[6], (Cmid,), dtype=jnp.float32))

    g2 = 1.0 + 0.1 * jax.random.normal(ks[7], (Cout,), dtype=jnp.float32)
    b2 = 0.1 * jax.random.normal(ks[8], (Cout,), dtype=jnp.float32)
    m2 = jnp.zeros((Cout,), dtype=jnp.float32)
    v2 = jnp.ones((Cout,), dtype=jnp.float32)

    out = double_conv(x, w1, g1, b1, m1, v1, w2, g2, b2, m2, v2)
    out = jax.block_until_ready(out)

    ref = _reference(x, w1, g1, b1, m1, v1, w2, g2, b2, m2, v2)
    assert out.shape == (B, Cout, L)
    assert jnp.allclose(out, ref, atol=1e-4, rtol=1e-4), (
        f"max err {jnp.max(jnp.abs(out - ref))}"
    )
    print("KERNEL_OK")
</pallas_src>

<mosaic_0001>
module attributes {stable_mosaic.version = 11 : i64} {
  func.func @_double_conv_kernel(%arg0: i32, %arg1: memref<1x4x16xf32, #tpu.memory_space<vmem>>, %arg2: memref<8x24xf32, #tpu.memory_space<vmem>>, %arg3: memref<8x1xf32, #tpu.memory_space<vmem>>, %arg4: memref<8x24xf32, #tpu.memory_space<vmem>>, %arg5: memref<8x1xf32, #tpu.memory_space<vmem>>, %arg6: memref<2x128xf32, #tpu.memory_space<vmem>>, %arg7: memref<1x8x16xf32, #tpu.memory_space<vmem>>, %arg8: memref<24x128xf32, #tpu.memory_space<vmem>>) attributes {dimension_semantics = [#tpu.dimension_semantics<parallel>], iteration_bounds = array<i64: 2>, scalar_prefetch = 0 : i64, scratch_operands = 1 : i64, tpu.core_type = #tpu.core_type<tc>, window_params = [{transform_indices = @transform_0, window_bounds = array<i64: 1, 4, 16>}, {pipeline_mode = #tpu.pipeline_mode<synchronous>, transform_indices = @transform_1, window_bounds = array<i64: 8, 24>}, {pipeline_mode = #tpu.pipeline_mode<synchronous>, transform_indices = @transform_2, window_bounds = array<i64: 8, 1>}, {pipeline_mode = #tpu.pipeline_mode<synchronous>, transform_indices = @transform_3, window_bounds = array<i64: 8, 24>}, {pipeline_mode = #tpu.pipeline_mode<synchronous>, transform_indices = @transform_4, window_bounds = array<i64: 8, 1>}, {pipeline_mode = #tpu.pipeline_mode<synchronous>, transform_indices = @transform_5, window_bounds = array<i64: 2, 128>}, {transform_indices = @transform_6, window_bounds = array<i64: 1, 8, 16>}]} {
    %c0 = arith.constant 0 : index
    %c0_0 = arith.constant 0 : index
    %0 = vector.load %arg6[%c0, %c0_0] : memref<2x128xf32, #tpu.memory_space<vmem>>, vector<1x128xf32>
    %cst = arith.constant 0.000000e+00 : f32
    %1 = vector.broadcast %cst : f32 to vector<1x128xf32>
    %2 = arith.cmpf one, %0, %1 : vector<1x128xf32>
    %c1 = arith.constant 1 : index
    %c0_1 = arith.constant 0 : index
    %3 = vector.load %arg6[%c1, %c0_1] : memref<2x128xf32, #tpu.memory_space<vmem>>, vector<1x128xf32>
    %cst_2 = arith.constant 0.000000e+00 : f32
    %4 = vector.broadcast %cst_2 : f32 to vector<1x128xf32>
    %5 = arith.cmpf one, %3, %4 : vector<1x128xf32>
    %cst_3 = arith.constant 0.000000e+00 : f32
    %6 = vector.broadcast %cst_3 : f32 to vector<4x128xf32>
    %c4 = arith.constant 4 : index
    %c0_4 = arith.constant 0 : index
    %7 = vector.load %arg8[%c4, %c0_4] : memref<24x128xf32, #tpu.memory_space<vmem>>, vector<4x128xf32>
    tpu.vector_store %arg8[%c4, %c0_4], %6 {strides = array<i32>} : memref<24x128xf32, #tpu.memory_space<vmem>>, vector<4x128xf32>,
    %c12 = arith.constant 12 : index
    %c0_5 = arith.constant 0 : index
    %8 = vector.load %arg8[%c12, %c0_5] : memref<24x128xf32, #tpu.memory_space<vmem>>, vector<4x128xf32>
    tpu.vector_store %arg8[%c12, %c0_5], %6 {strides = array<i32>} : memref<24x128xf32, #tpu.memory_space<vmem>>, vector<4x128xf32>,
    %c20 = arith.constant 20 : index
    %c0_6 = arith.constant 0 : index
    %9 = vector.load %arg8[%c20, %c0_6] : memref<24x128xf32, #tpu.memory_space<vmem>>, vector<4x128xf32>
    tpu.vector_store %arg8[%c20, %c0_6], %6 {strides = array<i32>} : memref<24x128xf32, #tpu.memory_space<vmem>>, vector<4x128xf32>,
    %c0_7 = arith.constant 0 : index
    %c0_8 = arith.constant 0 : index
    %c0_9 = arith.constant 0 : index
    %10 = vector.load %arg1[%c0_7, %c0_8, %c0_9] : memref<1x4x16xf32, #tpu.memory_space<vmem>>, vector<1x4x16xf32>
    %11 = vector.shape_cast %10 : vector<1x4x16xf32> to vector<4x16xf32>
    %cst_10 = arith.constant 0.000000e+00 : f32
    %12 = vector.broadcast %cst_10 : f32 to vector<4x112xf32>
    %13 = tpu.concatenate %11, %12 in 1 : vector<4x16xf32>, vector<4x112xf32> -> vector<4x128xf32>
    %c8 = arith.constant 8 : index
    %c0_11 = arith.constant 0 : index
    %14 = vector.load %arg8[%c8, %c0_11] : memref<24x128xf32, #tpu.memory_space<vmem>>, vector<4x128xf32>
    tpu.vector_store %arg8[%c8, %c0_11], %13 {strides = array<i32>} : memref<24x128xf32, #tpu.memory_space<vmem>>, vector<4x128xf32>,
    %15 = vector.extract_strided_slice %13 {offsets = [0, 127], sizes = [4, 1], strides = [1, 1]} : vector<4x128xf32> to vector<4x1xf32>
    %16 = vector.extract_strided_slice %13 {offsets = [0, 0], sizes = [4, 127], strides = [1, 1]} : vector<4x128xf32> to vector<4x127xf32>
    %17 = tpu.concatenate %15, %16 in 1 : vector<4x1xf32>, vector<4x127xf32> -> vector<4x128xf32>
    %cst_12 = arith.constant 0.000000e+00 : f32
    %18 = vector.shape_cast %2 : vector<1x128xi1> to vector<1x128xi1>
    %19 = vector.broadcast %18 : vector<1x128xi1> to vector<4x128xi1>
    %20 = vector.broadcast %cst_12 : f32 to vector<4x128xf32>
    %21 = arith.select %19, %17, %20 : vector<4x128xi1>, vector<4x128xf32>
    %c0_13 = arith.constant 0 : index
    %c0_14 = arith.constant 0 : index
    %22 = vector.load %arg8[%c0_13, %c0_14] : memref<24x128xf32, #tpu.memory_space<vmem>>, vector<4x128xf32>
    tpu.vector_store %arg8[%c0_13, %c0_14], %21 {strides = array<i32>} : memref<24x128xf32, #tpu.memory_space<vmem>>, vector<4x128xf32>,
    %23 = vector.extract_strided_slice %13 {offsets = [0, 1], sizes = [4, 127], strides = [1, 1]} : vector<4x128xf32> to vector<4x127xf32>
    %24 = vector.extract_strided_slice %13 {offsets = [0, 0], sizes = [4, 1], strides = [1, 1]} : vector<4x128xf32> to vector<4x1xf32>
    %25 = tpu.concatenate %23, %24 in 1 : vector<4x127xf32>, vector<4x1xf32> -> vector<4x128xf32>
    %cst_15 = arith.constant 0.000000e+00 : f32
    %26 = vector.shape_cast %5 : vector<1x128xi1> to vector<1x128xi1>
    %27 = vector.broadcast %26 : vector<1x128xi1> to vector<4x128xi1>
    %28 = vector.broadcast %cst_15 : f32 to vector<4x128xf32>
    %29 = arith.select %27, %25, %28 : vector<4x128xi1>, vector<4x128xf32>
    %c16 = arith.constant 16 : index
    %c0_16 = arith.constant 0 : index
    %30 = vector.load %arg8[%c16, %c0_16] : memref<24x128xf32, #tpu.memory_space<vmem>>, vector<4x128xf32>
    tpu.vector_store %arg8[%c16, %c0_16], %29 {strides = array<i32>} : memref<24x128xf32, #tpu.memory_space<vmem>>, vector<4x128xf32>,
    %c0_17 = arith.constant 0 : index
    %c0_18 = arith.constant 0 : index
    %31 = vector.load %arg2[%c0_17, %c0_18] : memref<8x24xf32, #tpu.memory_space<vmem>>, vector<8x24xf32>
    %c0_19 = arith.constant 0 : index
    %c0_20 = arith.constant 0 : index
    %32 = vector.load %arg8[%c0_19, %c0_20] : memref<24x128xf32, #tpu.memory_space<vmem>>, vector<24x128xf32>
    %cst_21 = arith.constant dense<0.000000e+00> : vector<8x128xf32>
    %33 = tpu.matmul %31, %32, %cst_21 {dimension_numbers = #tpu.dot_dimension_numbers<[1], [0], [0], [1], [0, 0, 1, 1], [], []>} : vector<8x24xf32>, vector<24x128xf32>, vector<8x128xf32> -> vector<8x128xf32>
    %c0_22 = arith.constant 0 : index
    %c0_23 = arith.constant 0 : index
    %34 = vector.load %arg3[%c0_22, %c0_23] : memref<8x1xf32, #tpu.memory_space<vmem>>, vector<8x1xf32>
    %35 = vector.broadcast %34 : vector<8x1xf32> to vector<8x128xf32>
    %36 = arith.addf %33, %35 : vector<8x128xf32>
    %cst_24 = arith.constant 0.000000e+00 : f32
    %37 = vector.broadcast %cst_24 : f32 to vector<8x128xf32>
    %38 = arith.maximumf %36, %37 : vector<8x128xf32>
    %c8_25 = arith.constant 8 : index
    %c0_26 = arith.constant 0 : index
    %39 = vector.load %arg8[%c8_25, %c0_26] : memref<24x128xf32, #tpu.memory_space<vmem>>, vector<8x128xf32>
    tpu.vector_store %arg8[%c8_25, %c0_26], %38 {strides = array<i32>} : memref<24x128xf32, #tpu.memory_space<vmem>>, vector<8x128xf32>,
    %40 = vector.extract_strided_slice %38 {offsets = [0, 127], sizes = [8, 1], strides = [1, 1]} : vector<8x128xf32> to vector<8x1xf32>
    %41 = vector.extract_strided_slice %38 {offsets = [0, 0], sizes = [8, 127], strides = [1, 1]} : vector<8x128xf32> to vector<8x127xf32>
    %42 = tpu.concatenate %40, %41 in 1 : vector<8x1xf32>, vector<8x127xf32> -> vector<8x128xf32>
    %cst_27 = arith.constant 0.000000e+00 : f32
    %43 = vector.shape_cast %2 : vector<1x128xi1> to vector<1x128xi1>
    %44 = vector.broadcast %43 : vector<1x128xi1> to vector<8x128xi1>
    %45 = vector.broadcast %cst_27 : f32 to vector<8x128xf32>
    %46 = arith.select %44, %42, %45 : vector<8x128xi1>, vector<8x128xf32>
    %c0_28 = arith.constant 0 : index
    %c0_29 = arith.constant 0 : index
    %47 = vector.load %arg8[%c0_28, %c0_29] : memref<24x128xf32, #tpu.memory_space<vmem>>, vector<8x128xf32>
    tpu.vector_store %arg8[%c0_28, %c0_29], %46 {strides = array<i32>} : memref<24x128xf32, #tpu.memory_space<vmem>>, vector<8x128xf32>,
    %48 = vector.extract_strided_slice %38 {offsets = [0, 1], sizes = [8, 127], strides = [1, 1]} : vector<8x128xf32> to vector<8x127xf32>
    %49 = vector.extract_strided_slice %38 {offsets = [0, 0], sizes = [8, 1], strides = [1, 1]} : vector<8x128xf32> to vector<8x1xf32>
    %50 = tpu.concatenate %48, %49 in 1 : vector<8x127xf32>, vector<8x1xf32> -> vector<8x128xf32>
    %cst_30 = arith.constant 0.000000e+00 : f32
    %51 = vector.shape_cast %5 : vector<1x128xi1> to vector<1x128xi1>
    %52 = vector.broadcast %51 : vector<1x128xi1> to vector<8x128xi1>
    %53 = vector.broadcast %cst_30 : f32 to vector<8x128xf32>
    %54 = arith.select %52, %50, %53 : vector<8x128xi1>, vector<8x128xf32>
    %c16_31 = arith.constant 16 : index
    %c0_32 = arith.constant 0 : index
    %55 = vector.load %arg8[%c16_31, %c0_32] : memref<24x128xf32, #tpu.memory_space<vmem>>, vector<8x128xf32>
    tpu.vector_store %arg8[%c16_31, %c0_32], %54 {strides = array<i32>} : memref<24x128xf32, #tpu.memory_space<vmem>>, vector<8x128xf32>,
    %c0_33 = arith.constant 0 : index
    %c0_34 = arith.constant 0 : index
    %56 = vector.load %arg4[%c0_33, %c0_34] : memref<8x24xf32, #tpu.memory_space<vmem>>, vector<8x24xf32>
    %c0_35 = arith.constant 0 : index
    %c0_36 = arith.constant 0 : index
    %57 = vector.load %arg8[%c0_35, %c0_36] : memref<24x128xf32, #tpu.memory_space<vmem>>, vector<24x128xf32>
    %cst_37 = arith.constant dense<0.000000e+00> : vector<8x128xf32>
    %58 = tpu.matmul %56, %57, %cst_37 {dimension_numbers = #tpu.dot_dimension_numbers<[1], [0], [0], [1], [0, 0, 1, 1], [], []>} : vector<8x24xf32>, vector<24x128xf32>, vector<8x128xf32> -> vector<8x128xf32>
    %c0_38 = arith.constant 0 : index
    %c0_39 = arith.constant 0 : index
    %59 = vector.load %arg5[%c0_38, %c0_39] : memref<8x1xf32, #tpu.memory_space<vmem>>, vector<8x1xf32>
    %60 = vector.broadcast %59 : vector<8x1xf32> to vector<8x128xf32>
    %61 = arith.addf %58, %60 : vector<8x128xf32>
    %cst_40 = arith.constant 0.000000e+00 : f32
    %62 = vector.broadcast %cst_40 : f32 to vector<8x128xf32>
    %63 = arith.maximumf %61, %62 : vector<8x128xf32>
    %64 = vector.extract_strided_slice %63 {offsets = [0, 0], sizes = [8, 16], strides = [1, 1]} : vector<8x128xf32> to vector<8x16xf32>
    %c0_41 = arith.constant 0 : index
    %c0_42 = arith.constant 0 : index
    %c0_43 = arith.constant 0 : index
    %65 = vector.load %arg7[%c0_41, %c0_42, %c0_43] : memref<1x8x16xf32, #tpu.memory_space<vmem>>, vector<1x8x16xf32>
    %66 = vector.shape_cast %65 : vector<1x8x16xf32> to vector<8x16xf32>
    %67 = vector.shape_cast %64 : vector<8x16xf32> to vector<1x8x16xf32>
    tpu.vector_store %arg7[%c0_41, %c0_42, %c0_43], %67 {strides = array<i32>} : memref<1x8x16xf32, #tpu.memory_space<vmem>>, vector<1x8x16xf32>,
    return
  }
  func.func @transform_0(%arg0: i32) -> (i32, i32, i32) {
    %c0_i32 = arith.constant 0 : i32
    %c0_i32_0 = arith.constant 0 : i32
    %c0_i32_1 = arith.constant 0 : i32
    return %arg0, %c0_i32, %c0_i32_0 : i32, i32, i32
  }
  func.func @transform_1(%arg0: i32) -> (i32, i32) {
    %c0_i32 = arith.constant 0 : i32
    %c0_i32_0 = arith.constant 0 : i32
    %c0_i32_1 = arith.constant 0 : i32
    return %c0_i32, %c0_i32_0 : i32, i32
  }
  func.func @transform_2(%arg0: i32) -> (i32, i32) {
    %c0_i32 = arith.constant 0 : i32
    %c0_i32_0 = arith.constant 0 : i32
    %c0_i32_1 = arith.constant 0 : i32
    return %c0_i32, %c0_i32_0 : i32, i32
  }
  func.func @transform_3(%arg0: i32) -> (i32, i32) {
    %c0_i32 = arith.constant 0 : i32
    %c0_i32_0 = arith.constant 0 : i32
    %c0_i32_1 = arith.constant 0 : i32
    return %c0_i32, %c0_i32_0 : i32, i32
  }
  func.func @transform_4(%arg0: i32) -> (i32, i32) {
    %c0_i32 = arith.constant 0 : i32
    %c0_i32_0 = arith.constant 0 : i32
    %c0_i32_1 = arith.constant 0 : i32
    return %c0_i32, %c0_i32_0 : i32, i32
  }
  func.func @transform_5(%arg0: i32) -> (i32, i32) {
    %c0_i32 = arith.constant 0 : i32
    %c0_i32_0 = arith.constant 0 : i32
    %c0_i32_1 = arith.constant 0 : i32
    return %c0_i32, %c0_i32_0 : i32, i32
  }
  func.func @transform_6(%arg0: i32) -> (i32, i32, i32) {
    %c0_i32 = arith.constant 0 : i32
    %c0_i32_0 = arith.constant 0 : i32
    %c0_i32_1 = arith.constant 0 : i32
    return %arg0, %c0_i32, %c0_i32_0 : i32, i32, i32
  }
}

</mosaic_0001>

<llo_original>
// kernel: tpu_custom_call.1
$region0: #{tpu_custom_call.1}
  #allocation0 [shape = 'u32[]', space=smem, size = 0x4, offset = 0x4, fixed_abs, tag = 'smem constant byte address 0x4 - core index']
  #allocation1 [shape = 'u32[72,128]{1,0:T(1,128)}', space=vmem, size = 0x9000, scoped, tag = 'internal scratch']
  #allocation2 [shape = 'f32[24,128]{1,0:T(8,128)}', space=vmem, size = 0x3000, scoped, tag = 'scratch operand']
  %s0 = inlined_call_operand.vmem [shape: f32[2,4,16], index: 0, kind: input, shape index: {}]
  %s1 = inlined_call_operand.vmem [shape: f32[8,24], index: 1, kind: input, shape index: {}]
  %s2 = inlined_call_operand.vmem [shape: f32[8,1], index: 2, kind: input, shape index: {}]
  %s3 = inlined_call_operand.hbm [shape: f32[8,24], index: 3, kind: input, shape index: {}]
  %s4 = inlined_call_operand.vmem [shape: f32[8,1], index: 4, kind: input, shape index: {}]
  %s5 = inlined_call_operand.vmem [shape: f32[2,128], index: 5, kind: input, shape index: {}]
  %s6 = inlined_call_operand.hbm [shape: f32[2,8,16], index: 6, kind: output, shape index: {}]
  %s7 = sld [smem:[#allocation0]]
  $region61: #{tpu_custom_call.1} parent=0
    _
  %s9 = ssub.s32 1, %s7
  %s10 = scalar_select 0, %s9, %s7
  $region1: #{tpu_custom_call.1} parent=0
    #allocation3 [shape = 'u8[4096]{0}', space=vmem, size = 0x1000, scoped, tag = 'input window, operand 3, single buffered']
    #allocation4 [shape = 's32[2]{0}', space=sflag, size = 0x8, scoped, tag = 'scoped memory for tpu_custom_call.1']
    #allocation5 [shape = 's32[2]{0}', space=sflag, size = 0x8, scoped, tag = 'scoped memory for tpu_custom_call.1']
    #allocation6 [shape = 'u8[8192]{0}', space=vmem, size = 0x2000, scoped, tag = 'output window, operand 0']
    %11 = vsyncpa [#allocation4], 0
    %12 = vsyncpa [#allocation5], 0
    %s13 = scalar_lea.sflag [#allocation5], 1
    %14 = vsyncpa %s13, 0
    loop: start=0, step=1, limit=4
    $region2: #{tpu_custom_call.1} parent=1 // loop_pre_header
      _
    $region3: #{tpu_custom_call.1} parent=1 // loop_header
      %s16 = sphi 0, %s20
      %p17 = scmp.ge.s32.totalorder %s16, 4
      %s26 = sphi 0, %s28
      %s29 = sphi 0, %s26
      %s30 = sphi 0, %s29
      %s46 = sphi 0, %s30
      %s50 = sphi 0, %s50
      %s52 = sphi 0, %s50
      %s53 = sphi 0, %s52
      %s67 = sphi 0, %s53
      %s71 = sphi 0, %s71
      %s73 = sphi 0, %s71
      %s74 = sphi 0, %s73
      %s88 = sphi 0, %s74
      %s92 = sphi 0, %s92
      %s94 = sphi 0, %s92
      %s95 = sphi 0, %s94
      %s109 = sphi 0, %s95
      %s113 = sphi 0, %s113
      %s115 = sphi 0, %s113
      %s116 = sphi 0, %s115
      %s130 = sphi 0, %s116
      %s134 = sphi 0, %s134
      %s136 = sphi 0, %s134
      %s137 = sphi 0, %s136
      %s151 = sphi 0, %s137
      %s157 = sphi 0, %s159
      %s160 = sphi 0, %s157
      %s161 = sphi 0, %s160
      %s177 = sphi 0, %s161
    $region4: #{tpu_custom_call.1} parent=1 // loop_header_branch
      %19 = sbr.rel (%p17) target = $region8
    $region5: #{tpu_custom_call.1} parent=1 // loop_body
      %s21 = ssub.s32 %s16, 1
      %s22 = ssub.s32 %s16, 2
      %s23 = sadd.s32 %s16, 1
      %s24 = ssub.s32 %s16, %s23
      %p25 = scmp.eq.s32.totalorder %s24, 0
      %s27 = sadd.s32 %s26, 1
      %s28 = scalar_select %p25, %s26, %s27
      %p31 = pneg %p25
      %p32 = scmp.eq.s32.totalorder %s16, 1
      %p33 = por %p31, %p32
      %p34 = scmp.ne.s32.totalorder %s26, %s29
      %p35 = scmp.eq.s32.totalorder %s16, 0
      %p36 = por %p34, %p35
      %p37 = scmp.ne.s32.totalorder %s26, %s29
      %p38 = scmp.eq.s32.totalorder %s21, 1
      %p39 = por %p37, %p38
      %p40 = scmp.ne.s32.totalorder %s29, %s30
      %p41 = scmp.eq.s32.totalorder %s21, 0
      %p42 = por %p40, %p41
      %p43 = scmp.ne.s32.totalorder %s29, %s30
      %p44 = scmp.eq.s32.totalorder %s22, 1
      %p45 = por %p43, %p44
      %p47 = scmp.ne.s32.totalorder %s30, %s46
      %p48 = scmp.eq.s32.totalorder %s22, 0
      %p49 = por %p47, %p48
      %s51 = sadd.s32 %s50, 1
      %p54 = scmp.eq.s32.totalorder %s16, 1
      %p55 = scmp.ne.s32.totalorder %s50, %s52
      %p56 = scmp.eq.s32.totalorder %s16, 0
      %p57 = por %p55, %p56
      %p58 = scmp.ne.s32.totalorder %s50, %s52
      %p59 = scmp.eq.s32.totalorder %s21, 1
      %p60 = por %p58, %p59
      %p61 = scmp.ne.s32.totalorder %s52, %s53
      %p62 = scmp.eq.s32.totalorder %s21, 0
      %p63 = por %p61, %p62
      %p64 = scmp.ne.s32.totalorder %s52, %s53
      %p65 = scmp.eq.s32.totalorder %s22, 1
      %p66 = por %p64, %p65
      %p68 = scmp.ne.s32.totalorder %s53, %s67
      %p69 = scmp.eq.s32.totalorder %s22, 0
      %p70 = por %p68, %p69
      %s72 = sadd.s32 %s71, 1
      %p75 = scmp.eq.s32.totalorder %s16, 1
      %p76 = scmp.ne.s32.totalorder %s71, %s73
      %p77 = scmp.eq.s32.totalorder %s16, 0
      %p78 = por %p76, %p77
      %p79 = scmp.ne.s32.totalorder %s71, %s73
      %p80 = scmp.eq.s32.totalorder %s21, 1
      %p81 = por %p79, %p80
      %p82 = scmp.ne.s32.totalorder %s73, %s74
      %p83 = scmp.eq.s32.totalorder %s21, 0
      %p84 = por %p82, %p83
      %p85 = scmp.ne.s32.totalorder %s73, %s74
      %p86 = scmp.eq.s32.totalorder %s22, 1
      %p87 = por %p85, %p86
      %p89 = scmp.ne.s32.totalorder %s74, %s88
      %p90 = scmp.eq.s32.totalorder %s22, 0
      %p91 = por %p89, %p90
      %s93 = sadd.s32 %s92, 1
      %p96 = scmp.eq.s32.totalorder %s16, 1
      %p97 = scmp.ne.s32.totalorder %s92, %s94
      %p98 = scmp.eq.s32.totalorder %s16, 0
      %p99 = por %p97, %p98
      %p100 = scmp.ne.s32.totalorder %s92, %s94
      %p101 = scmp.eq.s32.totalorder %s21, 1
      %p102 = por %p100, %p101
      %p103 = scmp.ne.s32.totalorder %s94, %s95
      %p104 = scmp.eq.s32.totalorder %s21, 0
      %p105 = por %p103, %p104
      %p106 = scmp.ne.s32.totalorder %s94, %s95
      %p107 = scmp.eq.s32.totalorder %s22, 1
      %p108 = por %p106, %p107
      %p110 = scmp.ne.s32.totalorder %s95, %s109
      %p111 = scmp.eq.s32.totalorder %s22, 0
      %p112 = por %p110, %p111
      %s114 = sadd.s32 %s113, 1
      %p117 = scmp.eq.s32.totalorder %s16, 1
      %p118 = scmp.ne.s32.totalorder %s113, %s115
      %p119 = scmp.eq.s32.totalorder %s16, 0
      %p120 = por %p118, %p119
      %p121 = scmp.ne.s32.totalorder %s113, %s115
      %p122 = scmp.eq.s32.totalorder %s21, 1
      %p123 = por %p121, %p122
      %p124 = scmp.ne.s32.totalorder %s115, %s116
      %p125 = scmp.eq.s32.totalorder %s21, 0
      %p126 = por %p124, %p125
      %p127 = scmp.ne.s32.totalorder %s115, %s116
      %p128 = scmp.eq.s32.totalorder %s22, 1
      %p129 = por %p127, %p128
      %p131 = scmp.ne.s32.totalorder %s116, %s130
      %p132 = scmp.eq.s32.totalorder %s22, 0
      %p133 = por %p131, %p132
      %s135 = sadd.s32 %s134, 1
      %p138 = scmp.eq.s32.totalorder %s16, 1
      %p139 = scmp.ne.s32.totalorder %s134, %s136
      %p140 = scmp.eq.s32.totalorder %s16, 0
      %p141 = por %p139, %p140
      %p142 = scmp.ne.s32.totalorder %s134, %s136
      %p143 = scmp.eq.s32.totalorder %s21, 1
      %p144 = por %p142, %p143
      %p145 = scmp.ne.s32.totalorder %s136, %s137
      %p146 = scmp.eq.s32.totalorder %s21, 0
      %p147 = por %p145, %p146
      %p148 = scmp.ne.s32.totalorder %s136, %s137
      %p149 = scmp.eq.s32.totalorder %s22, 1
      %p150 = por %p148, %p149
      %p152 = scmp.ne.s32.totalorder %s137, %s151
      %p153 = scmp.eq.s32.totalorder %s22, 0
      %p154 = por %p152, %p153
      %s155 = ssub.s32 %s16, %s23
      %p156 = scmp.eq.s32.totalorder %s155, 0
      %s158 = sadd.s32 %s157, 1
      %s159 = scalar_select %p156, %s157, %s158
      %p162 = pneg %p156
      %p163 = scmp.eq.s32.totalorder %s16, 1
      %p164 = por %p162, %p163
      %p165 = scmp.ne.s32.totalorder %s157, %s160
      %p166 = scmp.eq.s32.totalorder %s16, 0
      %p167 = por %p165, %p166
      %p168 = scmp.ne.s32.totalorder %s157, %s160
      %p169 = scmp.eq.s32.totalorder %s21, 1
      %p170 = por %p168, %p169
      %p171 = scmp.ne.s32.totalorder %s160, %s161
      %p172 = scmp.eq.s32.totalorder %s21, 0
      %p173 = por %p171, %p172
      %p174 = scmp.ne.s32.totalorder %s160, %s161
      %p175 = scmp.eq.s32.totalorder %s22, 1
      %p176 = por %p174, %p175
      %p178 = scmp.ne.s32.totalorder %s161, %s177
      %p179 = scmp.eq.s32.totalorder %s22, 0
      %p180 = por %p178, %p179
      %p181 = scmp.le.s32.totalorder 1, %s16
      %p182 = scmp.lt.s32.totalorder %s16, 3
      %p183 = pnand %p181, %p182
      %p184 = pneg %p183
      // Predicated region
      $region9: #{tpu_custom_call.1} parent=5 // pred_check
        _
      $region10: #{tpu_custom_call.1} parent=5 // pred_check_branch
        %186 = sbr.rel (%p183) target = $region12
      $region11: #{tpu_custom_call.1} parent=5 // pred_region
        %s187 = ssub.s32 %s16, 1
        // Predicated region
        $region13: #{tpu_custom_call.1} parent=11 // pred_check
          %p188 = pneg %p63
        $region14: #{tpu_custom_call.1} parent=11 // pred_check_branch
          %190 = sbr.rel (%p188) target = $region16
        $region15: #{tpu_custom_call.1} parent=11 // pred_region
          _
        $region16: #{tpu_custom_call.1} parent=11 // pred_fallthru
          _
        // Predicated region
        $region17: #{tpu_custom_call.1} parent=11 // pred_check
          %p191 = pneg %p84
        $region18: #{tpu_custom_call.1} parent=11 // pred_check_branch
          %193 = sbr.rel (%p191) target = $region20
        $region19: #{tpu_custom_call.1} parent=11 // pred_region
          _
        $region20: #{tpu_custom_call.1} parent=11 // pred_fallthru
          _
        // Predicated region
        $region21: #{tpu_custom_call.1} parent=11 // pred_check
          %p194 = pneg %p105
        $region22: #{tpu_custom_call.1} parent=11 // pred_check_branch
          %196 = sbr.rel (%p194) target = $region24
        $region23: #{tpu_custom_call.1} parent=11 // pred_region
          %198 = vsyncadd [#allocation4], 0
          %s200 = sshll.u32 %s3, 4
          %s201 = int_to_ptr.hbm [resolvable:$true] %s200
          %s202 = sshll.u32 [#allocation3], 4
          %s203 = int_to_ptr.vmem [resolvable:$true] %s202
          %205 = dma.hbm_to_vmem [thread:$0]  %s201, 128, %s203, [#allocation4]
        $region24: #{tpu_custom_call.1} parent=11 // pred_fallthru
          _
        // Predicated region
        $region25: #{tpu_custom_call.1} parent=11 // pred_check
          %p206 = pneg %p126
        $region26: #{tpu_custom_call.1} parent=11 // pred_check_branch
          %208 = sbr.rel (%p206) target = $region28
        $region27: #{tpu_custom_call.1} parent=11 // pred_region
          _
        $region28: #{tpu_custom_call.1} parent=11 // pred_fallthru
          _
        // Predicated region
        $region29: #{tpu_custom_call.1} parent=11 // pred_check
          %p209 = pneg %p147
        $region30: #{tpu_custom_call.1} parent=11 // pred_check_branch
          %211 = sbr.rel (%p209) target = $region32
        $region31: #{tpu_custom_call.1} parent=11 // pred_region
          _
        $region32: #{tpu_custom_call.1} parent=11 // pred_fallthru
          _
      $region12: #{tpu_custom_call.1} parent=5 // pred_fallthru
        _
      %p212 = scmp.lt.s32.totalorder %s16, 2
      // Predicated region
      $region33: #{tpu_custom_call.1} parent=5 // pred_check
        %p213 = pneg %p212
      $region34: #{tpu_custom_call.1} parent=5 // pred_check_branch
        %215 = sbr.rel (%p213) target = $region36
      $region35: #{tpu_custom_call.1} parent=5 // pred_region
        // Predicated region
        $region37: #{tpu_custom_call.1} parent=35 // pred_check
          %p216 = pneg %p36
        $region38: #{tpu_custom_call.1} parent=35 // pred_check_branch
          %218 = sbr.rel (%p216) target = $region40
        $region39: #{tpu_custom_call.1} parent=35 // pred_region
          %p219 = scmp.lt.s32.totalorder %s16, 1
          %s220 = scalar_select %p219, %s16, 1
          %s221 = smul.addr %s220, 4
          %s222 = scalar_lea.vmem %s0, %s221
        $region40: #{tpu_custom_call.1} parent=35 // pred_fallthru
          _
      $region36: #{tpu_custom_call.1} parent=5 // pred_fallthru
        _
      %p223 = scmp.le.s32.totalorder 1, %s16
      %p224 = scmp.lt.s32.totalorder %s16, 3
      %p225 = pnand %p223, %p224
      %p226 = pneg %p225
      // Predicated region
      $region41: #{tpu_custom_call.1} parent=5 // pred_check
        _
      $region42: #{tpu_custom_call.1} parent=5 // pred_check_branch
        %228 = sbr.rel (%p225) target = $region44
      $region43: #{tpu_custom_call.1} parent=5 // pred_region
        %s229 = ssub.s32 %s16, 1
        // Predicated region
        $region45: #{tpu_custom_call.1} parent=43 // pred_check
          %p230 = pneg %p105
        $region46: #{tpu_custom_call.1} parent=43 // pred_check_branch
          %232 = sbr.rel (%p230) target = $region48
        $region47: #{tpu_custom_call.1} parent=43 // pred_region
          %234 = dma.done [#allocation4], 128
        $region48: #{tpu_custom_call.1} parent=43 // pred_fallthru
          _
        %p235 = scmp.lt.s32.totalorder %s21, 1
        %s236 = scalar_select %p235, %s21, 1
        %s237 = smul.addr %s236, 4
        %s238 = scalar_lea.vmem %s0, %s237
        %p239 = pneg %p42
        %p240 = pneg %p39
        %p241 = pneg %p63
        %p242 = pneg %p60
        %p243 = pneg %p84
        %p244 = pneg %p81
        %p245 = pneg %p105
        %p246 = pneg %p102
        %p247 = pneg %p126
        %p248 = pneg %p123
        %p249 = pneg %p147
        %p250 = pneg %p144
        %p251 = pneg %p173
        %p252 = pneg %p170
        %s253 = sand.u32 %s160, 1
        %s254 = scalar_lea.sflag [#allocation5], %s253
        %s255 = sand.u32 %s160, 1
        %s256 = smul.addr %s255, 8
        %s257 = scalar_lea.vmem [#allocation6], %s256
        %p258 = scmp.lt.s32.totalorder %s21, 1
        %s259 = scalar_select %p258, %s21, 1
        %s260 = smul.addr %s259, 4
        %s261 = scalar_lea.vmem %s0, %s260
        %v262 = vld [vmem:[%s5] sm:$0x1]
        %vm263 = vcmp.ne.f32.partialorder %v262, 0.0
        %v264 = vld [vmem:[%s5 + $0x1] sm:$0x1]
        %vm265 = vcmp.ne.f32.partialorder %v264, 0.0
        %266 = vst [vmem:[#allocation2 + $0x4] sm:$0xf] 0.0
        %267 = vst [vmem:[#allocation2 + $0xc] sm:$0xf] 0.0
        %268 = vst [vmem:[#allocation2 + $0x14] sm:$0xf] 0.0
        %v269 = vld [vmem:[%s261] sm:$0xf]
        %vm270 = vcmask 130048
        %v271 = vsel %vm270, %v269, 0.0
        %272 = vst [vmem:[#allocation2 + $0x8] sm:$0xf] %v271
        %274 = vrot.lane.b32.xlu0 %v271, 1
        %v275 = vpop.permute.xlu0 %274
        %v277 = vsel %vm263, 1, 0
        %v278 = vperm.slane %v277, 0
        %vm279 = vcmp.eq.s32.totalorder %v278, 1
        %v280 = vsel %vm279, %v275, 0.0
        %281 = vst [vmem:[#allocation2] sm:$0xf] %v280
        %282 = vrot.lane.b32.xlu0 %v271, 127
        %v283 = vpop.permute.xlu0 %282
        %v285 = vsel %vm265, 1, 0
        %v286 = vperm.slane %v285, 0
        %vm287 = vcmp.eq.s32.totalorder %v286, 1
        %v288 = vsel %vm287, %v283, 0.0
        %289 = vst [vmem:[#allocation2 + $0x10] sm:$0xf] %v288
        %v290 = vld [vmem:[%s1] sm:$0xff]
        %v291 = vld [vmem:[#allocation2] sm:$0xff]
        %v292 = vld [vmem:[#allocation2 + $0x8] sm:$0xff]
        %v293 = vld [vmem:[#allocation2 + $0x10] sm:$0xff]
        %v294 = vld [vmem:[%s2] sm:$0xff]
        %296 = vset.pattern.permute.xlu0 0
        %297 = vperm.xlu0 %296, %v294
        %v298 = vpop.permute.xlu0 %297
        %vm300 = vcmask 195584
        %v302 = vsel %vm300, %v290, 0
        %304 = vmatpush.msra.mxu0 0.0
        %305 = vmatpush.msra.mxu0 0.0
        %306 = vmatpush.msra.mxu0 0.0
        %307 = vmatpush.msra.mxu0 0.0
        %308 = vmatpush.msra.mxu0 0.0
        %309 = vmatpush.msra.mxu0 0.0
        %310 = vmatpush.msra.mxu0 0.0
        %311 = vmatpush.msra.mxu0 0.0
        %312 = vmatpush.msra.mxu0 0.0
        %313 = vmatpush.msra.mxu0 0.0
        %314 = vmatpush.msra.mxu0 0.0
        %315 = vmatpush.msra.mxu0 0.0
        %316 = vmatpush.msra.mxu0 0.0
        %317 = vmatpush.msra.mxu0 %v293
        %318 = vmatpush.msra.mxu0 %v292
        %319 = vmatpush.msra.mxu0 %v291
        %320 = vmatmul.f32.gmra.mxu0 %v302
        %v321 = vpop.f32.mrf.mxu0
        %v322 = vadd.f32 %v298, %v321
        %323 = vdwg.mxu0
        %v324 = vmax.f32 %v322, 0.0
        %325 = vst [vmem:[#allocation2 + $0x8] sm:$0xff] %v324
        %327 = vrot.lane.b32.xlu0 %v324, 1
        %v328 = vpop.permute.xlu0 %327
        %v330 = vsel %vm279, %v328, 0.0
        %331 = vst [vmem:[#allocation2] sm:$0xff] %v330
        %332 = vrot.lane.b32.xlu0 %v324, 127
        %v333 = vpop.permute.xlu0 %332
        %v335 = vsel %vm287, %v333, 0.0
        %336 = vst [vmem:[#allocation2 + $0x10] sm:$0xff] %v335
        %v337 = vld [vmem:[#allocation3] sm:$0xff]
        %v338 = vld [vmem:[#allocation2] sm:$0xff]
        %v339 = vld [vmem:[#allocation2 + $0x8] sm:$0xff]
        %v340 = vld [vmem:[#allocation2 + $0x10] sm:$0xff]
        %v341 = vld [vmem:[%s4] sm:$0xff]
        %343 = vset.pattern.permute.xlu0 0
        %344 = vperm.xlu0 %343, %v341
        %v345 = vpop.permute.xlu0 %344
        %v348 = vsel %vm300, %v337, 0
        %350 = vmatpush.msra.mxu0 0.0
        %351 = vmatpush.msra.mxu0 0.0
        %352 = vmatpush.msra.mxu0 0.0
        %353 = vmatpush.msra.mxu0 0.0
        %354 = vmatpush.msra.mxu0 0.0
        %355 = vmatpush.msra.mxu0 0.0
        %356 = vmatpush.msra.mxu0 0.0
        %357 = vmatpush.msra.mxu0 0.0
        %358 = vmatpush.msra.mxu0 0.0
        %359 = vmatpush.msra.mxu0 0.0
        %360 = vmatpush.msra.mxu0 0.0
        %361 = vmatpush.msra.mxu0 0.0
        %362 = vmatpush.msra.mxu0 0.0
        %363 = vmatpush.msra.mxu0 %v340
        %364 = vmatpush.msra.mxu0 %v339
        %365 = vmatpush.msra.mxu0 %v338
        %366 = vmatmul.f32.gmra.mxu0 %v348
        %v367 = vpop.f32.mrf.mxu0
        %v368 = vadd.f32 %v345, %v367
        %369 = vdwg.mxu0
        %v370 = vmax.f32 %v368, 0.0
        %371 = vst.msk [vmem:[%s257] sm:$0xff] %vm270, %v370
        %s372 = sand.u32 %s160, 1
        %s373 = scalar_lea.sflag [#allocation5], %s372
        %s374 = sand.u32 %s160, 1
        %s375 = smul.addr %s374, 8
        %s376 = scalar_lea.vmem [#allocation6], %s375
        // Predicated region
        $region49: #{tpu_custom_call.1} parent=43 // pred_check
          %p377 = pneg %p170
        $region50: #{tpu_custom_call.1} parent=43 // pred_check_branch
          %379 = sbr.rel (%p377) target = $region52
        $region51: #{tpu_custom_call.1} parent=43 // pred_region
          %381 = vsyncadd %s373, 0
          %s382 = smul.addr %s21, 8
          %s383 = scalar_lea.hbm %s6, %s382
          %s385 = sshll.u32 %s376, 4
          %s386 = int_to_ptr.vmem [resolvable:$true] %s385
          %s387 = sshll.u32 %s383, 4
          %s388 = int_to_ptr.hbm [resolvable:$true] %s387
          %390 = dma.vmem_to_hbm [thread:$0]  %s386, 128, %s388, %s373
        $region52: #{tpu_custom_call.1} parent=43 // pred_fallthru
          _
      $region44: #{tpu_custom_call.1} parent=5 // pred_fallthru
        _
      %p391 = scmp.le.s32.totalorder 2, %s16
      // Predicated region
      $region53: #{tpu_custom_call.1} parent=5 // pred_check
        %p392 = pneg %p391
      $region54: #{tpu_custom_call.1} parent=5 // pred_check_branch
        %394 = sbr.rel (%p392) target = $region56
      $region55: #{tpu_custom_call.1} parent=5 // pred_region
        %s395 = ssub.s32 %s16, 2
        // Predicated region
        $region57: #{tpu_custom_call.1} parent=55 // pred_check
          %p396 = pneg %p176
        $region58: #{tpu_custom_call.1} parent=55 // pred_check_branch
          %398 = sbr.rel (%p396) target = $region60
        $region59: #{tpu_custom_call.1} parent=55 // pred_region
          %s399 = sand.u32 %s161, 1
          %s400 = scalar_lea.sflag [#allocation5], %s399
          %s401 = sand.u32 %s161, 1
          %s402 = smul.addr %s401, 8
          %s403 = scalar_lea.vmem [#allocation6], %s402
          %405 = dma.done %s400, 128
        $region60: #{tpu_custom_call.1} parent=55 // pred_fallthru
          _
      $region56: #{tpu_custom_call.1} parent=5 // pred_fallthru
        _
    $region6: #{tpu_custom_call.1} parent=1 // loop_footer
      %s20 = sadd.s32 1, %s16
    $region7: #{tpu_custom_call.1} parent=1 // loop_footer_branch
      %15 = sbr.rel target = $region3
    $region8: #{tpu_custom_call.1} parent=1 // loop_exit
      _
    %406 = vsyncpa [#allocation4], 1
    %s407 = scalar_lea.sflag [#allocation4], 1
    %408 = vsyncpa %s407, 1
    %409 = vsyncpa [#allocation5], 1
    %s410 = scalar_lea.sflag [#allocation5], 1
    %411 = vsyncpa %s410, 1

</llo_original>
